<compile_context>
chip_gen: v6e
topology: v6e:2x2x1
jax: 0.10.0
libtpu: 0.0.40
codegen_flags: <defaults>
</compile_context>

<pallas_src>
import math

import jax
import jax.numpy as jnp
from jax.experimental import pallas as pl
from jax.experimental.pallas import tpu as pltpu


# ----------------------------------------------------------------------------
# Helpers
# ----------------------------------------------------------------------------
def _pick_tile(n: int, target: int, granule: int) -> int:
    """Largest divisor of n that is <= target and a multiple of `granule`.
    Falls back to n itself (a block equal to the full dim is always legal)."""
    if n <= target:
        return n
    t = (target // granule) * granule
    while t >= granule:
        if n % t == 0:
            return t
        t -= granule
    return n


def _dot_precision(dtype):
    """Full f32 precision for f32 operands (matches pl.dot allow_tf32=False);
    default (fast) path for bf16/fp8 operands."""
    if jnp.dtype(dtype) == jnp.float32:
        return jax.lax.Precision.HIGHEST
    return jax.lax.Precision.DEFAULT


# ----------------------------------------------------------------------------
# Kernel A: fused per-head QKV projection -> head-major (B, H, S, d_head)
# ----------------------------------------------------------------------------
def _qkv_proj_kernel(x_ref, w_ref, q_ref, k_ref, v_ref):
    dh = q_ref.shape[-1]
    prec = _dot_precision(x_ref.dtype)
    # One (ts, D) @ (D, 3*dh) matmul per head: 3x wider MXU N than per-tensor dots.
    y = jnp.dot(x_ref[0], w_ref[0],
                preferred_element_type=jnp.float32, precision=prec)   # (ts, 3*dh)
    q_ref[0, 0] = y[:, 0 * dh:1 * dh].astype(q_ref.dtype)
    k_ref[0, 0] = y[:, 1 * dh:2 * dh].astype(k_ref.dtype)
    v_ref[0, 0] = y[:, 2 * dh:3 * dh].astype(v_ref.dtype)


def _qkv_projection(x, wqkv_h, *, seq_tile):
    B, S, D = x.shape
    H, _, dh3 = wqkv_h.shape
    dh = dh3 // 3
    ts = seq_tile
    dtype = x.dtype
    out = jax.ShapeDtypeStruct((B, H, S, dh), dtype)
    return pl.pallas_call(
        _qkv_proj_kernel,
        out_shape=(out, out, out),
        grid_spec=pltpu.PrefetchScalarGridSpec(
            num_scalar_prefetch=0,
            # H innermost: the x tile's block index is constant along h, so the
            # same activation tile stays resident across all heads (no re-DMA).
            grid=(B, S // ts, H),
            in_specs=[
                pl.BlockSpec((1, ts, D), lambda b, si, h: (b, si, 0)),
                pl.BlockSpec((1, D, dh3), lambda b, si, h: (h, 0, 0)),
            ],
            out_specs=[
                pl.BlockSpec((1, 1, ts, dh), lambda b, si, h: (b, h, si, 0)),
                pl.BlockSpec((1, 1, ts, dh), lambda b, si, h: (b, h, si, 0)),
                pl.BlockSpec((1, 1, ts, dh), lambda b, si, h: (b, h, si, 0)),
            ],
        ),
        compiler_params=pltpu.CompilerParams(
            dimension_semantics=("parallel", "parallel", "parallel")),
    )(x, wqkv_h)


# ----------------------------------------------------------------------------
# Kernel B: causal flash attention over (B, H, q-tile, kv-tile) grid
# ----------------------------------------------------------------------------
def _flash_attn_kernel(q_ref, k_ref, v_ref, o_ref, m_scr, l_scr, acc_scr):
    qi = pl.program_id(2)
    ki = pl.program_id(3)
    prec = _dot_precision(q_ref.dtype)

    @pl.when(ki == 0)
    def _init():
        m_scr[...] = jnp.full_like(m_scr, -jnp.inf)
        l_scr[...] = jnp.zeros_like(l_scr)
        acc_scr[...] = jnp.zeros_like(acc_scr)

    def _online_update(apply_mask: bool):
        # Scale (including log2(e)) is folded into Wq, so s is already in log2
        # units and exp2 below implements the standard softmax exactly.
        q = q_ref[0, 0]                                 # (T, dh)
        k = k_ref[0, 0]                                 # (T, dh)
        v = v_ref[0, 0]                                 # (T, dh)
        s = jax.lax.dot_general(                        # contract last dims; no k.T
            q, k, (((1,), (1,)), ((), ())),
            preferred_element_type=jnp.float32, precision=prec)        # (T, T)

        if apply_mask:                                  # diagonal tile only (TQ == TK)
            t_q, t_k = s.shape
            row = jax.lax.broadcasted_iota(jnp.int32, (t_q, t_k), 0)
            col = jax.lax.broadcasted_iota(jnp.int32, (t_q, t_k), 1)
            s = jnp.where(col <= row, s, -jnp.inf)

        m_prev = m_scr[...]                                            # (T, 1)
        m_new = jnp.maximum(m_prev, jnp.max(s, axis=-1, keepdims=True))
        alpha = jnp.exp2(m_prev - m_new)
        p = jnp.exp2(s - m_new)                                        # (T, T)
        l_scr[...] = alpha * l_scr[...] + jnp.sum(p, axis=-1, keepdims=True)
        acc_scr[...] = alpha * acc_scr[...] + jnp.dot(
            p.astype(v.dtype), v, preferred_element_type=jnp.float32,
            precision=prec)
        m_scr[...] = m_new

    # Strictly below the diagonal: no masking work at all.
    @pl.when(ki < qi)
    def _interior():
        _online_update(apply_mask=False)

    # Diagonal tile: mask, then finalize this query tile (it is the last tile
    # that contributes to it).
    @pl.when(ki == qi)
    def _diag_and_finalize():
        _online_update(apply_mask=True)
        o_ref[0, 0] = (acc_scr[...] / l_scr[...]).astype(o_ref.dtype)


def _flash_attention(q, k, v, *, tile):
    B, H, S, dh = q.shape
    t = tile
    return pl.pallas_call(
        _flash_attn_kernel,
        out_shape=jax.ShapeDtypeStruct((B, H, S, dh), q.dtype),
        grid_spec=pltpu.PrefetchScalarGridSpec(
            num_scalar_prefetch=0,
            grid=(B, H, S // t, S // t),
            in_specs=[
                pl.BlockSpec((1, 1, t, dh), lambda b, h, qi, ki: (b, h, qi, 0)),
                # Clamp K/V block indices to the causal range: tiles strictly
                # above the diagonal repeat the previous block index and are
                # therefore never re-fetched (no wasted DMA/HBM traffic).
                pl.BlockSpec((1, 1, t, dh),
                             lambda b, h, qi, ki: (b, h, jnp.minimum(ki, qi), 0)),
                pl.BlockSpec((1, 1, t, dh),
                             lambda b, h, qi, ki: (b, h, jnp.minimum(ki, qi), 0)),
            ],
            out_specs=pl.BlockSpec(
                (1, 1, t, dh), lambda b, h, qi, ki: (b, h, qi, 0)),
            scratch_shapes=[
                pltpu.VMEM((t, 1), jnp.float32),    # running max m (log2 units)
                pltpu.VMEM((t, 1), jnp.float32),    # running denom l
                pltpu.VMEM((t, dh), jnp.float32),   # running weighted sum
            ],
        ),
        compiler_params=pltpu.CompilerParams(
            dimension_semantics=("parallel", "parallel", "parallel", "arbitrary")),
    )(q, k, v)


# ----------------------------------------------------------------------------
# Kernel C: output projection, head reduction folded into the kernel body
# ----------------------------------------------------------------------------
def _out_proj_kernel(a_ref, w_ref, o_ref):
    H = a_ref.shape[1]
    prec = _dot_precision(a_ref.dtype)
    # Static, fully-unrolled head loop: no H grid axis, W_out columns streamed
    # once per (b, si, ni) output tile, lane-dense (ts, tn) store at the end.
    acc = jnp.dot(a_ref[0, 0], w_ref[0],
                  preferred_element_type=jnp.float32, precision=prec)
    for h in range(1, H):
        acc = acc + jnp.dot(a_ref[0, h], w_ref[h],
                            preferred_element_type=jnp.float32, precision=prec)
    o_ref[0] = acc.astype(o_ref.dtype)


def _out_projection(attn, wo_h, out_dtype, *, seq_tile, col_tile):
    B, H, S, dh = attn.shape
    _, _, D = wo_h.shape
    ts, tn = seq_tile, col_tile
    return pl.pallas_call(
        _out_proj_kernel,
        out_shape=jax.ShapeDtypeStruct((B, S, D), out_dtype),
        grid_spec=pltpu.PrefetchScalarGridSpec(
            num_scalar_prefetch=0,
            grid=(B, S // ts, D // tn),
            in_specs=[
                pl.BlockSpec((1, H, ts, dh), lambda b, si, ni: (b, 0, si, 0)),
                pl.BlockSpec((H, dh, tn), lambda b, si, ni: (0, 0, ni)),
            ],
            out_specs=pl.BlockSpec((1, ts, tn), lambda b, si, ni: (b, si, ni)),
        ),
        compiler_params=pltpu.CompilerParams(
            dimension_semantics=("parallel", "parallel", "parallel")),
    )(attn, wo_h)


# ----------------------------------------------------------------------------
# Weight preparation (do this ONCE, outside the per-step hot path)
# ----------------------------------------------------------------------------
def prepare_mha_weights(w_qkv, w_out, num_heads, compute_dtype=None):
    """w_qkv: (3D, D), w_out: (D, D), PyTorch (out, in) layout.

    Returns:
      wqkv_h: (H, D, 3*d_head)  fused per-head [Q | K | V] projection, with
              log2(e)/sqrt(d_head) folded into the Q columns (exp2 softmax).
      wo_h:   (H, d_head, D)    per-head slice of W_out^T.
    """
    d3, d_model = w_qkv.shape
    assert d3 == 3 * d_model and d_model % num_heads == 0
    d_head = d_model // num_heads
    # 1/sqrt(dh) for scaled dot-product; log2(e) so the kernel can use exp2.
    scale = math.log2(math.e) / math.sqrt(d_head)

    w = w_qkv.reshape(3, num_heads, d_head, d_model)        # [qkv, h, dh, D_in]
    wq_h = jnp.transpose(w[0], (0, 2, 1)) * scale            # (H, D, dh)
    wk_h = jnp.transpose(w[1], (0, 2, 1))                    # (H, D, dh)
    wv_h = jnp.transpose(w[2], (0, 2, 1))                    # (H, D, dh)
    wqkv_h = jnp.concatenate([wq_h, wk_h, wv_h], axis=-1)    # (H, D, 3*dh)
    wo_h = w_out.T.reshape(num_heads, d_head, d_model)       # (H, dh, D)

    if compute_dtype is not None:
        wqkv_h = wqkv_h.astype(compute_dtype)
        wo_h = wo_h.astype(compute_dtype)
    return wqkv_h, wo_h


def causal_mha_pallas(x, wqkv_h, wo_h, *, compute_dtype=None):
    """x: (B, S, D); weights from prepare_mha_weights."""
    B, S, D = x.shape
    H, _, dh3 = wqkv_h.shape
    dh = dh3 // 3
    assert H * dh == D
    out_dtype = x.dtype
    if compute_dtype is not None:        # e.g. jnp.bfloat16 on v6e / v7x
        x = x.astype(compute_dtype)

    # Tile granule follows dtype sublane packing: 8 f32, 16 bf16, 32 int8/fp8.
    itemsize = jnp.dtype(x.dtype).itemsize
    granule = max(8, 8 * (4 // max(1, itemsize)))

    seq_tile = _pick_tile(S, 256, granule)     # projection / out-proj row tile
    attn_tile = _pick_tile(S, 256, granule)    # flash Q/KV tile (TQ == TK)
    col_tile = _pick_tile(D, 256, 128)         # out-proj column tile

    q, k, v = _qkv_projection(x, wqkv_h, seq_tile=seq_tile)
    attn = _flash_attention(q, k, v, tile=attn_tile)
    return _out_projection(attn, wo_h, out_dtype,
                           seq_tile=seq_tile, col_tile=col_tile)


# ----------------------------------------------------------------------------
# Pure-JAX reference (mirrors the PyTorch forward, full f32 matmul precision)
# ----------------------------------------------------------------------------
def causal_mha_reference(x, w_qkv, w_out, num_heads: int):
    B, S, D = x.shape
    d_head = D // num_heads
    hp = jax.lax.Precision.HIGHEST
    qkv = jnp.einsum('bsd,ed->bse', x, w_qkv, precision=hp)    # x @ w_qkv.T
    qkv = qkv.reshape(B, S, 3, num_heads, d_head)
    qkv = jnp.transpose(qkv, (2, 0, 3, 1, 4))                  # (3, B, H, S, d)
    q, k, v = qkv[0], qkv[1], qkv[2]
    dots = jnp.einsum('bhid,bhjd->bhij', q, k, precision=hp) / math.sqrt(d_head)
    mask = jnp.triu(jnp.ones((S, S), dtype=bool), k=1)
    dots = jnp.where(mask, -jnp.inf, dots)
    attn = jax.nn.softmax(dots, axis=-1)
    out = jnp.einsum('bhij,bhjd->bhid', attn, v, precision=hp)  # (B, H, S, d)
    out = jnp.transpose(out, (0, 2, 1, 3)).reshape(B, S, D)
    return jnp.einsum('bsd,ed->bse', out, w_out, precision=hp)  # out @ w_out.T


if __name__ == "__main__":
    batch, seq_len, d_model, num_heads = 2, 8, 32, 4

    key = jax.random.PRNGKey(0)
    kx, kqkv, kout = jax.random.split(key, 3)

    x = jax.random.normal(kx, (batch, seq_len, d_model), dtype=jnp.float32)
    w_qkv = jax.random.normal(kqkv, (3 * d_model, d_model), dtype=jnp.float32) \
        * (1.0 / math.sqrt(d_model))
    w_out = jax.random.normal(kout, (d_model, d_model), dtype=jnp.float32) \
        * (1.0 / math.sqrt(d_model))

    # Weight rearrangement happens once, outside the per-call path.
    wqkv_h, wo_h = prepare_mha_weights(w_qkv, w_out, num_heads)

    out = causal_mha_pallas(x, wqkv_h, wo_h)
    out = jax.block_until_ready(out)

    ref = causal_mha_reference(x, w_qkv, w_out, num_heads)
    assert out.shape == (batch, seq_len, d_model)
    err = float(jnp.max(jnp.abs(out - ref)))
    assert err < 2e-3, f"mismatch vs reference: max abs err {err}"

    print("KERNEL_OK")
</pallas_src>

<mosaic_0001>
module attributes {stable_mosaic.version = 11 : i64} {
  func.func @_qkv_proj_kernel(%arg0: i32, %arg1: i32, %arg2: i32, %arg3: memref<1x8x32xf32, #tpu.memory_space<vmem>>, %arg4: memref<1x32x24xf32, #tpu.memory_space<vmem>>, %arg5: memref<1x1x8x8xf32, #tpu.memory_space<vmem>>, %arg6: memref<1x1x8x8xf32, #tpu.memory_space<vmem>>, %arg7: memref<1x1x8x8xf32, #tpu.memory_space<vmem>>) attributes {dimension_semantics = [#tpu.dimension_semantics<parallel>, #tpu.dimension_semantics<parallel>, #tpu.dimension_semantics<parallel>], iteration_bounds = array<i64: 2, 1, 4>, scalar_prefetch = 0 : i64, scratch_operands = 0 : i64, tpu.core_type = #tpu.core_type<tc>, window_params = [{transform_indices = @transform_0, window_bounds = array<i64: 1, 8, 32>}, {transform_indices = @transform_1, window_bounds = array<i64: 1, 32, 24>}, {transform_indices = @transform_2, window_bounds = array<i64: 1, 1, 8, 8>}, {transform_indices = @transform_3, window_bounds = array<i64: 1, 1, 8, 8>}, {transform_indices = @transform_4, window_bounds = array<i64: 1, 1, 8, 8>}]} {
    %c0 = arith.constant 0 : index
    %c0_0 = arith.constant 0 : index
    %c0_1 = arith.constant 0 : index
    %0 = vector.load %arg3[%c0, %c0_0, %c0_1] : memref<1x8x32xf32, #tpu.memory_space<vmem>>, vector<1x8x32xf32>
    %1 = vector.shape_cast %0 : vector<1x8x32xf32> to vector<8x32xf32>
    %c0_2 = arith.constant 0 : index
    %c0_3 = arith.constant 0 : index
    %c0_4 = arith.constant 0 : index
    %2 = vector.load %arg4[%c0_2, %c0_3, %c0_4] : memref<1x32x24xf32, #tpu.memory_space<vmem>>, vector<1x32x24xf32>
    %3 = vector.shape_cast %2 : vector<1x32x24xf32> to vector<32x24xf32>
    %cst = arith.constant dense<0.000000e+00> : vector<8x24xf32>
    %4 = tpu.matmul %1, %3, %cst {dimension_numbers = #tpu.dot_dimension_numbers<[1], [0], [0], [1], [0, 0, 1, 1], [], []>, precision = #tpu.contract_precision<fp32>} : vector<8x32xf32>, vector<32x24xf32>, vector<8x24xf32> -> vector<8x24xf32>
    %5 = vector.extract_strided_slice %4 {offsets = [0, 0], sizes = [8, 8], strides = [1, 1]} : vector<8x24xf32> to vector<8x8xf32>
    %c0_5 = arith.constant 0 : index
    %c0_6 = arith.constant 0 : index
    %c0_7 = arith.constant 0 : index
    %c0_8 = arith.constant 0 : index
    %6 = vector.load %arg5[%c0_5, %c0_6, %c0_7, %c0_8] : memref<1x1x8x8xf32, #tpu.memory_space<vmem>>, vector<1x1x8x8xf32>
    %7 = vector.shape_cast %6 : vector<1x1x8x8xf32> to vector<8x8xf32>
    %8 = vector.shape_cast %5 : vector<8x8xf32> to vector<1x1x8x8xf32>
    tpu.vector_store %arg5[%c0_5, %c0_6, %c0_7, %c0_8], %8 {strides = array<i32>} : memref<1x1x8x8xf32, #tpu.memory_space<vmem>>, vector<1x1x8x8xf32>,
    %9 = vector.extract_strided_slice %4 {offsets = [0, 8], sizes = [8, 8], strides = [1, 1]} : vector<8x24xf32> to vector<8x8xf32>
    %c0_9 = arith.constant 0 : index
    %c0_10 = arith.constant 0 : index
    %c0_11 = arith.constant 0 : index
    %c0_12 = arith.constant 0 : index
    %10 = vector.load %arg6[%c0_9, %c0_10, %c0_11, %c0_12] : memref<1x1x8x8xf32, #tpu.memory_space<vmem>>, vector<1x1x8x8xf32>
    %11 = vector.shape_cast %10 : vector<1x1x8x8xf32> to vector<8x8xf32>
    %12 = vector.shape_cast %9 : vector<8x8xf32> to vector<1x1x8x8xf32>
    tpu.vector_store %arg6[%c0_9, %c0_10, %c0_11, %c0_12], %12 {strides = array<i32>} : memref<1x1x8x8xf32, #tpu.memory_space<vmem>>, vector<1x1x8x8xf32>,
    %13 = vector.extract_strided_slice %4 {offsets = [0, 16], sizes = [8, 8], strides = [1, 1]} : vector<8x24xf32> to vector<8x8xf32>
    %c0_13 = arith.constant 0 : index
    %c0_14 = arith.constant 0 : index
    %c0_15 = arith.constant 0 : index
    %c0_16 = arith.constant 0 : index
    %14 = vector.load %arg7[%c0_13, %c0_14, %c0_15, %c0_16] : memref<1x1x8x8xf32, #tpu.memory_space<vmem>>, vector<1x1x8x8xf32>
    %15 = vector.shape_cast %14 : vector<1x1x8x8xf32> to vector<8x8xf32>
    %16 = vector.shape_cast %13 : vector<8x8xf32> to vector<1x1x8x8xf32>
    tpu.vector_store %arg7[%c0_13, %c0_14, %c0_15, %c0_16], %16 {strides = array<i32>} : memref<1x1x8x8xf32, #tpu.memory_space<vmem>>, vector<1x1x8x8xf32>,
    return
  }
  func.func @transform_0(%arg0: i32, %arg1: i32, %arg2: i32) -> (i32, i32, i32) {
    %c0_i32 = arith.constant 0 : i32
    %c0_i32_0 = arith.constant 0 : i32
    return %arg0, %arg1, %c0_i32 : i32, i32, i32
  }
  func.func @transform_1(%arg0: i32, %arg1: i32, %arg2: i32) -> (i32, i32, i32) {
    %c0_i32 = arith.constant 0 : i32
    %c0_i32_0 = arith.constant 0 : i32
    %c0_i32_1 = arith.constant 0 : i32
    return %arg2, %c0_i32, %c0_i32_0 : i32, i32, i32
  }
  func.func @transform_2(%arg0: i32, %arg1: i32, %arg2: i32) -> (i32, i32, i32, i32) {
    %c0_i32 = arith.constant 0 : i32
    %c0_i32_0 = arith.constant 0 : i32
    return %arg0, %arg2, %arg1, %c0_i32 : i32, i32, i32, i32
  }
  func.func @transform_3(%arg0: i32, %arg1: i32, %arg2: i32) -> (i32, i32, i32, i32) {
    %c0_i32 = arith.constant 0 : i32
    %c0_i32_0 = arith.constant 0 : i32
    return %arg0, %arg2, %arg1, %c0_i32 : i32, i32, i32, i32
  }
  func.func @transform_4(%arg0: i32, %arg1: i32, %arg2: i32) -> (i32, i32, i32, i32) {
    %c0_i32 = arith.constant 0 : i32
    %c0_i32_0 = arith.constant 0 : i32
    return %arg0, %arg2, %arg1, %c0_i32 : i32, i32, i32, i32
  }
}

</mosaic_0001>

<llo_original>
// kernel: tpu_custom_call.1
$region0: #{tpu_custom_call.1}
  #allocation0 [shape = 'u32[]', space=smem, size = 0x4, offset = 0x4, fixed_abs, tag = 'smem constant byte address 0x4 - core index']
  #allocation1 [shape = 'u32[144,128]{1,0:T(1,128)}', space=vmem, size = 0x12000, scoped, tag = 'internal scratch']
  %s0 = inlined_call_operand.vmem [shape: f32[2,8,32], index: 0, kind: input, shape index: {}]
  %s1 = inlined_call_operand.vmem [shape: f32[4,32,24], index: 1, kind: input, shape index: {}]
  %s2 = inlined_call_operand.hbm [shape: f32[2,4,8,8], index: 2, kind: output, shape index: {0}]
  %s3 = inlined_call_operand.hbm [shape: f32[2,4,8,8], index: 3, kind: output, shape index: {1}]
  %s4 = inlined_call_operand.hbm [shape: f32[2,4,8,8], index: 4, kind: output, shape index: {2}]
  %5 = xla_tuple %s2, %s3, %s4
  %s6 = sld [smem:[#allocation0]]
  $region57: #{tpu_custom_call.1} parent=0
    _
  %s8 = ssub.s32 1, %s6
  %s9 = scalar_select 0, %s8, %s6
  $region1: #{tpu_custom_call.1} parent=0
    #allocation2 [shape = 'u8[8192]{0}', space=vmem, size = 0x2000, scoped, tag = 'output window, operand 0']
    #allocation3 [shape = 's32[2]{0}', space=sflag, size = 0x8, scoped, tag = 'scoped memory for tpu_custom_call.1']
    #allocation4 [shape = 'u8[8192]{0}', space=vmem, size = 0x2000, scoped, tag = 'output window, operand 1']
    #allocation5 [shape = 's32[2]{0}', space=sflag, size = 0x8, scoped, tag = 'scoped memory for tpu_custom_call.1']
    #allocation6 [shape = 'u8[8192]{0}', space=vmem, size = 0x2000, scoped, tag = 'output window, operand 2']
    %10 = vsyncpa [#allocation3], 0
    %s11 = scalar_lea.sflag [#allocation3], 1
    %12 = vsyncpa %s11, 0
    %13 = vsyncpa [#allocation5], 0
    %s14 = scalar_lea.sflag [#allocation5], 1
    %15 = vsyncpa %s14, 0
    loop: start=0, step=1, limit=10
    $region2: #{tpu_custom_call.1} parent=1 // loop_pre_header
      _
    $region3: #{tpu_custom_call.1} parent=1 // loop_header
      %s17 = sphi 0, %s21
      %p18 = scmp.ge.s32.totalorder %s17, 10
      %s24 = sphi 0, %s43
      %s25 = sphi 0, %s39
      %s26 = sphi 0, %s35
      %s27 = sphi 0, %s24
      %s28 = sphi 0, %s25
      %s29 = sphi 0, %s26
      %s30 = sphi 0, %s27
      %s31 = sphi 0, %s28
      %s32 = sphi 0, %s29
      %s48 = sphi 0, %s50
      %s51 = sphi 0, %s48
      %s52 = sphi 0, %s51
      %s68 = sphi 0, %s52
      %s74 = sphi 0, %s76
      %s77 = sphi 0, %s74
      %s78 = sphi 0, %s77
      %s94 = sphi 0, %s78
      %s104 = sphi 0, %s106
      %s107 = sphi 0, %s104
      %s108 = sphi 0, %s107
      %s124 = sphi 0, %s108
      %s134 = sphi 0, %s136
      %s137 = sphi 0, %s134
      %s138 = sphi 0, %s137
      %s154 = sphi 0, %s138
      %s164 = sphi 0, %s166
      %s167 = sphi 0, %s164
      %s168 = sphi 0, %s167
      %s184 = sphi 0, %s168
    $region4: #{tpu_custom_call.1} parent=1 // loop_header_branch
      %20 = sbr.rel (%p18) target = $region8
    $region5: #{tpu_custom_call.1} parent=1 // loop_body
      %s22 = ssub.s32 %s17, 1
      %s23 = ssub.s32 %s17, 2
      %s33 = sadd.s32 1, %s26
      %p34 = scmp.ge.s32.totalorder %s33, 4
      %s35 = scalar_select %p34, 0, %s33
      %s36 = sadd.s32 1, %s25
      %s37 = scalar_select %p34, %s36, %s25
      %p38 = scmp.ge.s32.totalorder %s37, 1
      %s39 = scalar_select %p38, 0, %s37
      %s40 = sadd.s32 1, %s24
      %s41 = scalar_select %p38, %s40, %s24
      %p42 = scmp.ge.s32.totalorder %s41, 2
      %s43 = scalar_select %p42, 0, %s41
      %s44 = ssub.s32 %s24, %s43
      %s45 = ssub.s32 %s25, %s39
      %s46 = sor.u32 %s44, %s45
      %p47 = scmp.eq.s32.totalorder %s46, 0
      %s49 = sadd.s32 %s48, 1
      %s50 = scalar_select %p47, %s48, %s49
      %p53 = pneg %p47
      %p54 = scmp.eq.s32.totalorder %s17, 7
      %p55 = por %p53, %p54
      %p56 = scmp.ne.s32.totalorder %s48, %s51
      %p57 = scmp.eq.s32.totalorder %s17, 0
      %p58 = por %p56, %p57
      %p59 = scmp.ne.s32.totalorder %s48, %s51
      %p60 = scmp.eq.s32.totalorder %s22, 7
      %p61 = por %p59, %p60
      %p62 = scmp.ne.s32.totalorder %s51, %s52
      %p63 = scmp.eq.s32.totalorder %s22, 0
      %p64 = por %p62, %p63
      %p65 = scmp.ne.s32.totalorder %s51, %s52
      %p66 = scmp.eq.s32.totalorder %s23, 7
      %p67 = por %p65, %p66
      %p69 = scmp.ne.s32.totalorder %s52, %s68
      %p70 = scmp.eq.s32.totalorder %s23, 0
      %p71 = por %p69, %p70
      %s72 = ssub.s32 %s26, %s35
      %p73 = scmp.eq.s32.totalorder %s72, 0
      %s75 = sadd.s32 %s74, 1
      %s76 = scalar_select %p73, %s74, %s75
      %p79 = pneg %p73
      %p80 = scmp.eq.s32.totalorder %s17, 7
      %p81 = por %p79, %p80
      %p82 = scmp.ne.s32.totalorder %s74, %s77
      %p83 = scmp.eq.s32.totalorder %s17, 0
      %p84 = por %p82, %p83
      %p85 = scmp.ne.s32.totalorder %s74, %s77
      %p86 = scmp.eq.s32.totalorder %s22, 7
      %p87 = por %p85, %p86
      %p88 = scmp.ne.s32.totalorder %s77, %s78
      %p89 = scmp.eq.s32.totalorder %s22, 0
      %p90 = por %p88, %p89
      %p91 = scmp.ne.s32.totalorder %s77, %s78
      %p92 = scmp.eq.s32.totalorder %s23, 7
      %p93 = por %p91, %p92
      %p95 = scmp.ne.s32.totalorder %s78, %s94
      %p96 = scmp.eq.s32.totalorder %s23, 0
      %p97 = por %p95, %p96
      %s98 = ssub.s32 %s24, %s43
      %s99 = ssub.s32 %s26, %s35
      %s100 = sor.u32 %s98, %s99
      %s101 = ssub.s32 %s25, %s39
      %s102 = sor.u32 %s100, %s101
      %p103 = scmp.eq.s32.totalorder %s102, 0
      %s105 = sadd.s32 %s104, 1
      %s106 = scalar_select %p103, %s104, %s105
      %p109 = pneg %p103
      %p110 = scmp.eq.s32.totalorder %s17, 7
      %p111 = por %p109, %p110
      %p112 = scmp.ne.s32.totalorder %s104, %s107
      %p113 = scmp.eq.s32.totalorder %s17, 0
      %p114 = por %p112, %p113
      %p115 = scmp.ne.s32.totalorder %s104, %s107
      %p116 = scmp.eq.s32.totalorder %s22, 7
      %p117 = por %p115, %p116
      %p118 = scmp.ne.s32.totalorder %s107, %s108
      %p119 = scmp.eq.s32.totalorder %s22, 0
      %p120 = por %p118, %p119
      %p121 = scmp.ne.s32.totalorder %s107, %s108
      %p122 = scmp.eq.s32.totalorder %s23, 7
      %p123 = por %p121, %p122
      %p125 = scmp.ne.s32.totalorder %s108, %s124
      %p126 = scmp.eq.s32.totalorder %s23, 0
      %p127 = por %p125, %p126
      %s128 = ssub.s32 %s24, %s43
      %s129 = ssub.s32 %s26, %s35
      %s130 = sor.u32 %s128, %s129
      %s131 = ssub.s32 %s25, %s39
      %s132 = sor.u32 %s130, %s131
      %p133 = scmp.eq.s32.totalorder %s132, 0
      %s135 = sadd.s32 %s134, 1
      %s136 = scalar_select %p133, %s134, %s135
      %p139 = pneg %p133
      %p140 = scmp.eq.s32.totalorder %s17, 7
      %p141 = por %p139, %p140
      %p142 = scmp.ne.s32.totalorder %s134, %s137
      %p143 = scmp.eq.s32.totalorder %s17, 0
      %p144 = por %p142, %p143
      %p145 = scmp.ne.s32.totalorder %s134, %s137
      %p146 = scmp.eq.s32.totalorder %s22, 7
      %p147 = por %p145, %p146
      %p148 = scmp.ne.s32.totalorder %s137, %s138
      %p149 = scmp.eq.s32.totalorder %s22, 0
      %p150 = por %p148, %p149
      %p151 = scmp.ne.s32.totalorder %s137, %s138
      %p152 = scmp.eq.s32.totalorder %s23, 7
      %p153 = por %p151, %p152
      %p155 = scmp.ne.s32.totalorder %s138, %s154
      %p156 = scmp.eq.s32.totalorder %s23, 0
      %p157 = por %p155, %p156
      %s158 = ssub.s32 %s24, %s43
      %s159 = ssub.s32 %s26, %s35
      %s160 = sor.u32 %s158, %s159
      %s161 = ssub.s32 %s25, %s39
      %s162 = sor.u32 %s160, %s161
      %p163 = scmp.eq.s32.totalorder %s162, 0
      %s165 = sadd.s32 %s164, 1
      %s166 = scalar_select %p163, %s164, %s165
      %p169 = pneg %p163
      %p170 = scmp.eq.s32.totalorder %s17, 7
      %p171 = por %p169, %p170
      %p172 = scmp.ne.s32.totalorder %s164, %s167
      %p173 = scmp.eq.s32.totalorder %s17, 0
      %p174 = por %p172, %p173
      %p175 = scmp.ne.s32.totalorder %s164, %s167
      %p176 = scmp.eq.s32.totalorder %s22, 7
      %p177 = por %p175, %p176
      %p178 = scmp.ne.s32.totalorder %s167, %s168
      %p179 = scmp.eq.s32.totalorder %s22, 0
      %p180 = por %p178, %p179
      %p181 = scmp.ne.s32.totalorder %s167, %s168
      %p182 = scmp.eq.s32.totalorder %s23, 7
      %p183 = por %p181, %p182
      %p185 = scmp.ne.s32.totalorder %s168, %s184
      %p186 = scmp.eq.s32.totalorder %s23, 0
      %p187 = por %p185, %p186
      %p188 = scmp.le.s32.totalorder 1, %s17
      %p189 = scmp.lt.s32.totalorder %s17, 9
      %p190 = pnand %p188, %p189
      %p191 = pneg %p190
      // Predicated region
      $region9: #{tpu_custom_call.1} parent=5 // pred_check
        _
      $region10: #{tpu_custom_call.1} parent=5 // pred_check_branch
        %193 = sbr.rel (%p190) target = $region12
      $region11: #{tpu_custom_call.1} parent=5 // pred_region
        %s194 = ssub.s32 %s17, 1
      $region12: #{tpu_custom_call.1} parent=5 // pred_fallthru
        _
      %p195 = scmp.lt.s32.totalorder %s17, 8
      // Predicated region
      $region13: #{tpu_custom_call.1} parent=5 // pred_check
        %p196 = pneg %p195
      $region14: #{tpu_custom_call.1} parent=5 // pred_check_branch
        %198 = sbr.rel (%p196) target = $region16
      $region15: #{tpu_custom_call.1} parent=5 // pred_region
        // Predicated region
        $region17: #{tpu_custom_call.1} parent=15 // pred_check
          %p199 = pneg %p58
        $region18: #{tpu_custom_call.1} parent=15 // pred_check_branch
          %201 = sbr.rel (%p199) target = $region20
        $region19: #{tpu_custom_call.1} parent=15 // pred_region
          %p202 = scmp.lt.s32.totalorder %s24, 1
          %s203 = scalar_select %p202, %s24, 1
          %p204 = scmp.lt.s32.totalorder %s25, 0
          %s205 = scalar_select %p204, %s25, 0
          %s206 = sadd.s32 %s205, %s203
          %s207 = smul.addr %s206, 8
          %s208 = scalar_lea.vmem %s0, %s207
        $region20: #{tpu_custom_call.1} parent=15 // pred_fallthru
          _
        // Predicated region
        $region21: #{tpu_custom_call.1} parent=15 // pred_check
          %p209 = pneg %p84
        $region22: #{tpu_custom_call.1} parent=15 // pred_check_branch
          %211 = sbr.rel (%p209) target = $region24
        $region23: #{tpu_custom_call.1} parent=15 // pred_region
          %p212 = scmp.lt.s32.totalorder %s26, 3
          %s213 = scalar_select %p212, %s26, 3
          %s214 = smul.addr %s213, 4
          %s215 = smul.addr %s214, 8
          %s216 = scalar_lea.vmem %s1, %s215
        $region24: #{tpu_custom_call.1} parent=15 // pred_fallthru
          _
      $region16: #{tpu_custom_call.1} parent=5 // pred_fallthru
        _
      %p217 = scmp.le.s32.totalorder 1, %s17
      %p218 = scmp.lt.s32.totalorder %s17, 9
      %p219 = pnand %p217, %p218
      %p220 = pneg %p219
      // Predicated region
      $region25: #{tpu_custom_call.1} parent=5 // pred_check
        _
      $region26: #{tpu_custom_call.1} parent=5 // pred_check_branch
        %222 = sbr.rel (%p219) target = $region28
      $region27: #{tpu_custom_call.1} parent=5 // pred_region
        %s223 = ssub.s32 %s17, 1
        %p224 = scmp.lt.s32.totalorder %s27, 1
        %s225 = scalar_select %p224, %s27, 1
        %p226 = scmp.lt.s32.totalorder %s28, 0
        %s227 = scalar_select %p226, %s28, 0
        %s228 = sadd.s32 %s227, %s225
        %s229 = smul.addr %s228, 8
        %s230 = scalar_lea.vmem %s0, %s229
        %p231 = pneg %p64
        %p232 = pneg %p61
        %p233 = scmp.lt.s32.totalorder %s29, 3
        %s234 = scalar_select %p233, %s29, 3
        %s235 = smul.addr %s234, 4
        %s236 = smul.addr %s235, 8
        %s237 = scalar_lea.vmem %s1, %s236
        %p238 = pneg %p90
        %p239 = pneg %p87
        %p240 = pneg %p120
        %p241 = pneg %p117
        %s242 = sand.u32 %s107, 1
        %s243 = scalar_lea.sflag [#allocation3], %s242
        %s244 = sand.u32 %s107, 1
        %s245 = smul.addr %s244, 8
        %s246 = scalar_lea.vmem [#allocation2], %s245
        %p247 = pneg %p150
        %p248 = pneg %p147
        %s249 = sand.u32 %s22, 1
        %s250 = scalar_lea.sflag [#allocation5], %s249
        %s251 = sand.u32 %s137, 1
        %s252 = smul.addr %s251, 8
        %s253 = scalar_lea.vmem [#allocation4], %s252
        %p254 = pneg %p180
        %p255 = pneg %p177
        %s256 = sand.u32 %s22, 1
        %s257 = scalar_lea.sflag [#allocation5], %s256
        %s258 = sand.u32 %s167, 1
        %s259 = smul.addr %s258, 8
        %s260 = scalar_lea.vmem [#allocation6], %s259
        %p261 = scmp.lt.s32.totalorder %s27, 1
        %s262 = scalar_select %p261, %s27, 1
        %p263 = scmp.lt.s32.totalorder %s28, 0
        %s264 = scalar_select %p263, %s28, 0
        %s265 = sadd.s32 %s264, %s262
        %s266 = smul.addr %s265, 8
        %s267 = scalar_lea.vmem %s0, %s266
        %p268 = scmp.lt.s32.totalorder %s29, 3
        %s269 = scalar_select %p268, %s29, 3
        %s270 = smul.addr %s269, 4
        %s271 = smul.addr %s270, 8
        %s272 = scalar_lea.vmem %s1, %s271
        %v273 = vld [vmem:[%s267] sm:$0xff]
        %v274 = vld [vmem:[%s272] sm:$0xff]
        %v275 = vld [vmem:[%s272 + $0x8] sm:$0xff]
        %v276 = vld [vmem:[%s272 + $0x10] sm:$0xff]
        %v277 = vld [vmem:[%s272 + $0x18] sm:$0xff]
        %vm278 = vcmask 261120
        %v280 = vsel %vm278, %v273, 0
        %282 = vmatprep.subr.mxu0 0.0
        %283 = vmatpush1.msra.mxu0 0.0
        %284 = vmatprep.subr.mxu0 0.0
        %285 = vmatpush1.msra.mxu0 0.0
        %286 = vmatprep.subr.mxu0 0.0
        %287 = vmatpush1.msra.mxu0 0.0
        %288 = vmatprep.subr.mxu0 0.0
        %289 = vmatpush1.msra.mxu0 0.0
        %290 = vmatprep.subr.mxu0 0.0
        %291 = vmatpush1.msra.mxu0 0.0
        %292 = vmatprep.subr.mxu0 0.0
        %293 = vmatpush1.msra.mxu0 0.0
        %294 = vmatprep.subr.mxu0 0.0
        %295 = vmatpush1.msra.mxu0 0.0
        %296 = vmatprep.subr.mxu0 0.0
        %297 = vmatpush1.msra.mxu0 0.0
        %298 = vmatprep.subr.mxu0 0.0
        %299 = vmatpush1.msra.mxu0 0.0
        %300 = vmatprep.subr.mxu0 0.0
        %301 = vmatpush1.msra.mxu0 0.0
        %302 = vmatprep.subr.mxu0 0.0
        %303 = vmatpush1.msra.mxu0 0.0
        %304 = vmatprep.subr.mxu0 0.0
        %305 = vmatpush1.msra.mxu0 0.0
        %306 = vmatprep.subr.mxu0 0.0
        %v307 = vand.u32 %v277, 4294901760
        %308 = vmatpush1.msra.mxu0 %v307
        %309 = vmatprep.subr.mxu0 0.0
        %v310 = vand.u32 %v276, 4294901760
        %311 = vmatpush1.msra.mxu0 %v310
        %312 = vmatprep.subr.mxu0 0.0
        %v313 = vand.u32 %v275, 4294901760
        %314 = vmatpush1.msra.mxu0 %v313
        %315 = vmatprep.subr.mxu0 0.0
        %v316 = vand.u32 %v274, 4294901760
        %317 = vmatpush1.msra.mxu0 %v316
        %318 = vmatprep.subr.mxu0 0.0
        %319 = vmatpush2.msra.mxu0 0.0
        %320 = vmatprep.subr.mxu0 0.0
        %321 = vmatpush2.msra.mxu0 0.0
        %322 = vmatprep.subr.mxu0 0.0
        %323 = vmatpush2.msra.mxu0 0.0
        %324 = vmatprep.subr.mxu0 0.0
        %325 = vmatpush2.msra.mxu0 0.0
        %326 = vmatprep.subr.mxu0 0.0
        %327 = vmatpush2.msra.mxu0 0.0
        %328 = vmatprep.subr.mxu0 0.0
        %329 = vmatpush2.msra.mxu0 0.0
        %330 = vmatprep.subr.mxu0 0.0
        %331 = vmatpush2.msra.mxu0 0.0
        %332 = vmatprep.subr.mxu0 0.0
        %333 = vmatpush2.msra.mxu0 0.0
        %334 = vmatprep.subr.mxu0 0.0
        %335 = vmatpush2.msra.mxu0 0.0
        %336 = vmatprep.subr.mxu0 0.0
        %337 = vmatpush2.msra.mxu0 0.0
        %338 = vmatprep.subr.mxu0 0.0
        %339 = vmatpush2.msra.mxu0 0.0
        %340 = vmatprep.subr.mxu0 0.0
        %341 = vmatpush2.msra.mxu0 0.0
        %342 = vmatprep.subr.mxu0 0.0
        %343 = vmatpush2.msra.mxu0 0.0
        %344 = vmatprep.subr.mxu0 0.0
        %345 = vmatpush2.msra.mxu0 0.0
        %346 = vmatprep.subr.mxu0 0.0
        %347 = vmatpush2.msra.mxu0 0.0
        %348 = vmatprep.subr.mxu0 0.0
        %349 = vmatpush2.msra.mxu0 0.0
        %350 = vmatprep.mubr.f32.mxu0 0.0
        %v351 = vand.u32 %v280, 4294901760
        %v352 = vsub.f32 %v280, %v351
        %v353 = vand.u32 %v352, 4294901760
        %v354 = vsub.f32 %v352, %v353
        %v355 = vand.u32 %v354, 4294901760
        %356 = vmatmul.mubr.f32.gmra.mxu0 %v355
        %v357 = vpop.f32.mrf.mxu0
        %v358 = vadd.f32 0.0, %v357
        %v359 = vpop.f32.mrf.mxu0
        %360 = vdwg.mxu0
        %361 = vmatprep.subr.mxu0 0.0
        %362 = vmatpush1.msra.mxu0 0.0
        %363 = vmatprep.subr.mxu0 0.0
        %364 = vmatpush1.msra.mxu0 0.0
        %365 = vmatprep.subr.mxu0 0.0
        %366 = vmatpush1.msra.mxu0 0.0
        %367 = vmatprep.subr.mxu0 0.0
        %368 = vmatpush1.msra.mxu0 0.0
        %369 = vmatprep.subr.mxu0 0.0
        %370 = vmatpush1.msra.mxu0 0.0
        %371 = vmatprep.subr.mxu0 0.0
        %372 = vmatpush1.msra.mxu0 0.0
        %373 = vmatprep.subr.mxu0 0.0
        %374 = vmatpush1.msra.mxu0 0.0
        %375 = vmatprep.subr.mxu0 0.0
        %376 = vmatpush1.msra.mxu0 0.0
        %377 = vmatprep.subr.mxu0 0.0
        %378 = vmatpush1.msra.mxu0 0.0
        %379 = vmatprep.subr.mxu0 0.0
        %380 = vmatpush1.msra.mxu0 0.0
        %381 = vmatprep.subr.mxu0 0.0
        %382 = vmatpush1.msra.mxu0 0.0
        %383 = vmatprep.subr.mxu0 0.0
        %384 = vmatpush1.msra.mxu0 0.0
        %385 = vmatprep.subr.mxu0 0.0
        %v386 = vand.u32 %v277, 4294901760
        %v387 = vsub.f32 %v277, %v386
        %v388 = vand.u32 %v387, 4294901760
        %v389 = vsub.f32 %v387, %v388
        %v390 = vand.u32 %v389, 4294901760
        %391 = vmatpush1.msra.mxu0 %v390
        %392 = vmatprep.subr.mxu0 0.0
        %v393 = vand.u32 %v276, 4294901760
        %v394 = vsub.f32 %v276, %v393
        %v395 = vand.u32 %v394, 4294901760
        %v396 = vsub.f32 %v394, %v395
        %v397 = vand.u32 %v396, 4294901760
        %398 = vmatpush1.msra.mxu0 %v397
        %399 = vmatprep.subr.mxu0 0.0
        %v400 = vand.u32 %v275, 4294901760
        %v401 = vsub.f32 %v275, %v400
        %v402 = vand.u32 %v401, 4294901760
        %v403 = vsub.f32 %v401, %v402
        %v404 = vand.u32 %v403, 4294901760
        %405 = vmatpush1.msra.mxu0 %v404
        %406 = vmatprep.subr.mxu0 0.0
        %v407 = vand.u32 %v274, 4294901760
        %v408 = vsub.f32 %v274, %v407
        %v409 = vand.u32 %v408, 4294901760
        %v410 = vsub.f32 %v408, %v409
        %v411 = vand.u32 %v410, 4294901760
        %412 = vmatpush1.msra.mxu0 %v411
        %413 = vmatprep.subr.mxu0 0.0
        %414 = vmatpush2.msra.mxu0 0.0
        %415 = vmatprep.subr.mxu0 0.0
        %416 = vmatpush2.msra.mxu0 0.0
        %417 = vmatprep.subr.mxu0 0.0
        %418 = vmatpush2.msra.mxu0 0.0
        %419 = vmatprep.subr.mxu0 0.0
        %420 = vmatpush2.msra.mxu0 0.0
        %421 = vmatprep.subr.mxu0 0.0
        %422 = vmatpush2.msra.mxu0 0.0
        %423 = vmatprep.subr.mxu0 0.0
        %424 = vmatpush2.msra.mxu0 0.0
        %425 = vmatprep.subr.mxu0 0.0
        %426 = vmatpush2.msra.mxu0 0.0
        %427 = vmatprep.subr.mxu0 0.0
        %428 = vmatpush2.msra.mxu0 0.0
        %429 = vmatprep.subr.mxu0 0.0
        %430 = vmatpush2.msra.mxu0 0.0
        %431 = vmatprep.subr.mxu0 0.0
        %432 = vmatpush2.msra.mxu0 0.0
        %433 = vmatprep.subr.mxu0 0.0
        %434 = vmatpush2.msra.mxu0 0.0
        %435 = vmatprep.subr.mxu0 0.0
        %436 = vmatpush2.msra.mxu0 0.0
        %437 = vmatprep.subr.mxu0 0.0
        %438 = vmatpush2.msra.mxu0 0.0
        %439 = vmatprep.subr.mxu0 0.0
        %440 = vmatpush2.msra.mxu0 0.0
        %441 = vmatprep.subr.mxu0 0.0
        %442 = vmatpush2.msra.mxu0 0.0
        %443 = vmatprep.subr.mxu0 0.0
        %444 = vmatpush2.msra.mxu0 0.0
        %445 = vmatprep.mubr.f32.mxu0 0.0
        %v446 = vand.u32 %v280, 4294901760
        %447 = vmatmul.mubr.f32.gmra.mxu0 %v446
        %v448 = vpop.f32.mrf.mxu0
        %v449 = vadd.f32 %v358, %v448
        %v450 = vpop.f32.mrf.mxu0
        %451 = vdwg.mxu0
        %452 = vmatprep.subr.mxu0 0.0
        %453 = vmatpush1.msra.mxu0 0.0
        %454 = vmatprep.subr.mxu0 0.0
        %455 = vmatpush1.msra.mxu0 0.0
        %456 = vmatprep.subr.mxu0 0.0
        %457 = vmatpush1.msra.mxu0 0.0
        %458 = vmatprep.subr.mxu0 0.0
        %459 = vmatpush1.msra.mxu0 0.0
        %460 = vmatprep.subr.mxu0 0.0
        %461 = vmatpush1.msra.mxu0 0.0
        %462 = vmatprep.subr.mxu0 0.0
        %463 = vmatpush1.msra.mxu0 0.0
        %464 = vmatprep.subr.mxu0 0.0
        %465 = vmatpush1.msra.mxu0 0.0
        %466 = vmatprep.subr.mxu0 0.0
        %467 = vmatpush1.msra.mxu0 0.0
        %468 = vmatprep.subr.mxu0 0.0
        %469 = vmatpush1.msra.mxu0 0.0
        %470 = vmatprep.subr.mxu0 0.0
        %471 = vmatpush1.msra.mxu0 0.0
        %472 = vmatprep.subr.mxu0 0.0
        %473 = vmatpush1.msra.mxu0 0.0
        %474 = vmatprep.subr.mxu0 0.0
        %475 = vmatpush1.msra.mxu0 0.0
        %476 = vmatprep.subr.mxu0 0.0
        %v477 = vand.u32 %v277, 4294901760
        %v478 = vsub.f32 %v277, %v477
        %479 = vmatpush1.msra.mxu0 %v478
        %480 = vmatprep.subr.mxu0 0.0
        %v481 = vand.u32 %v276, 4294901760
        %v482 = vsub.f32 %v276, %v481
        %483 = vmatpush1.msra.mxu0 %v482
        %484 = vmatprep.subr.mxu0 0.0
        %v485 = vand.u32 %v275, 4294901760
        %v486 = vsub.f32 %v275, %v485
        %487 = vmatpush1.msra.mxu0 %v486
        %488 = vmatprep.subr.mxu0 0.0
        %v489 = vand.u32 %v274, 4294901760
        %v490 = vsub.f32 %v274, %v489
        %491 = vmatpush1.msra.mxu0 %v490
        %492 = vmatprep.subr.mxu0 0.0
        %493 = vmatpush2.msra.mxu0 0.0
        %494 = vmatprep.subr.mxu0 0.0
        %495 = vmatpush2.msra.mxu0 0.0
        %496 = vmatprep.subr.mxu0 0.0
        %497 = vmatpush2.msra.mxu0 0.0
        %498 = vmatprep.subr.mxu0 0.0
        %499 = vmatpush2.msra.mxu0 0.0
        %500 = vmatprep.subr.mxu0 0.0
        %501 = vmatpush2.msra.mxu0 0.0
        %502 = vmatprep.subr.mxu0 0.0
        %503 = vmatpush2.msra.mxu0 0.0
        %504 = vmatprep.subr.mxu0 0.0
        %505 = vmatpush2.msra.mxu0 0.0
        %506 = vmatprep.subr.mxu0 0.0
        %507 = vmatpush2.msra.mxu0 0.0
        %508 = vmatprep.subr.mxu0 0.0
        %509 = vmatpush2.msra.mxu0 0.0
        %510 = vmatprep.subr.mxu0 0.0
        %511 = vmatpush2.msra.mxu0 0.0
        %512 = vmatprep.subr.mxu0 0.0
        %513 = vmatpush2.msra.mxu0 0.0
        %514 = vmatprep.subr.mxu0 0.0
        %515 = vmatpush2.msra.mxu0 0.0
        %516 = vmatprep.subr.mxu0 0.0
        %517 = vmatpush2.msra.mxu0 0.0
        %518 = vmatprep.subr.mxu0 0.0
        %519 = vmatpush2.msra.mxu0 0.0
        %520 = vmatprep.subr.mxu0 0.0
        %521 = vmatpush2.msra.mxu0 0.0
        %522 = vmatprep.subr.mxu0 0.0
        %523 = vmatpush2.msra.mxu0 0.0
        %524 = vmatprep.mubr.f32.mxu0 0.0
        %v525 = vand.u32 %v280, 4294901760
        %v526 = vsub.f32 %v280, %v525
        %527 = vmatmul.mubr.f32.gmra.mxu0 %v526
        %v528 = vpop.f32.mrf.mxu0
        %v529 = vadd.f32 %v449, %v528
        %v530 = vpop.f32.mrf.mxu0
        %531 = vdwg.mxu0
        %532 = vmatprep.subr.mxu0 0.0
        %533 = vmatpush1.msra.mxu0 0.0
        %534 = vmatprep.subr.mxu0 0.0
        %535 = vmatpush1.msra.mxu0 0.0
        %536 = vmatprep.subr.mxu0 0.0
        %537 = vmatpush1.msra.mxu0 0.0
        %538 = vmatprep.subr.mxu0 0.0
        %539 = vmatpush1.msra.mxu0 0.0
        %540 = vmatprep.subr.mxu0 0.0
        %541 = vmatpush1.msra.mxu0 0.0
        %542 = vmatprep.subr.mxu0 0.0
        %543 = vmatpush1.msra.mxu0 0.0
        %544 = vmatprep.subr.mxu0 0.0
        %545 = vmatpush1.msra.mxu0 0.0
        %546 = vmatprep.subr.mxu0 0.0
        %547 = vmatpush1.msra.mxu0 0.0
        %548 = vmatprep.subr.mxu0 0.0
        %549 = vmatpush1.msra.mxu0 0.0
        %550 = vmatprep.subr.mxu0 0.0
        %551 = vmatpush1.msra.mxu0 0.0
        %552 = vmatprep.subr.mxu0 0.0
        %553 = vmatpush1.msra.mxu0 0.0
        %554 = vmatprep.subr.mxu0 0.0
        %555 = vmatpush1.msra.mxu0 0.0
        %556 = vmatprep.subr.mxu0 0.0
        %v557 = vand.u32 %v277, 4294901760
        %558 = vmatpush1.msra.mxu0 %v557
        %559 = vmatprep.subr.mxu0 0.0
        %v560 = vand.u32 %v276, 4294901760
        %561 = vmatpush1.msra.mxu0 %v560
        %562 = vmatprep.subr.mxu0 0.0
        %v563 = vand.u32 %v275, 4294901760
        %564 = vmatpush1.msra.mxu0 %v563
        %565 = vmatprep.subr.mxu0 0.0
        %v566 = vand.u32 %v274, 4294901760
        %567 = vmatpush1.msra.mxu0 %v566
        %568 = vmatprep.subr.mxu0 0.0
        %569 = vmatpush2.msra.mxu0 0.0
        %570 = vmatprep.subr.mxu0 0.0
        %571 = vmatpush2.msra.mxu0 0.0
        %572 = vmatprep.subr.mxu0 0.0
        %573 = vmatpush2.msra.mxu0 0.0
        %574 = vmatprep.subr.mxu0 0.0
        %575 = vmatpush2.msra.mxu0 0.0
        %576 = vmatprep.subr.mxu0 0.0
        %577 = vmatpush2.msra.mxu0 0.0
        %578 = vmatprep.subr.mxu0 0.0
        %579 = vmatpush2.msra.mxu0 0.0
        %580 = vmatprep.subr.mxu0 0.0
        %581 = vmatpush2.msra.mxu0 0.0
        %582 = vmatprep.subr.mxu0 0.0
        %583 = vmatpush2.msra.mxu0 0.0
        %584 = vmatprep.subr.mxu0 0.0
        %585 = vmatpush2.msra.mxu0 0.0
        %586 = vmatprep.subr.mxu0 0.0
        %587 = vmatpush2.msra.mxu0 0.0
        %588 = vmatprep.subr.mxu0 0.0
        %589 = vmatpush2.msra.mxu0 0.0
        %590 = vmatprep.subr.mxu0 0.0
        %591 = vmatpush2.msra.mxu0 0.0
        %592 = vmatprep.subr.mxu0 0.0
        %593 = vmatpush2.msra.mxu0 0.0
        %594 = vmatprep.subr.mxu0 0.0
        %595 = vmatpush2.msra.mxu0 0.0
        %596 = vmatprep.subr.mxu0 0.0
        %597 = vmatpush2.msra.mxu0 0.0
        %598 = vmatprep.subr.mxu0 0.0
        %599 = vmatpush2.msra.mxu0 0.0
        %600 = vmatprep.mubr.f32.mxu0 0.0
        %v601 = vand.u32 %v280, 4294901760
        %v602 = vsub.f32 %v280, %v601
        %v603 = vand.u32 %v602, 4294901760
        %604 = vmatmul.mubr.f32.gmra.mxu0 %v603
        %v605 = vpop.f32.mrf.mxu0
        %v606 = vadd.f32 %v529, %v605
        %v607 = vpop.f32.mrf.mxu0
        %608 = vdwg.mxu0
        %609 = vmatprep.subr.mxu0 0.0
        %610 = vmatpush1.msra.mxu0 0.0
        %611 = vmatprep.subr.mxu0 0.0
        %612 = vmatpush1.msra.mxu0 0.0
        %613 = vmatprep.subr.mxu0 0.0
        %614 = vmatpush1.msra.mxu0 0.0
        %615 = vmatprep.subr.mxu0 0.0
        %616 = vmatpush1.msra.mxu0 0.0
        %617 = vmatprep.subr.mxu0 0.0
        %618 = vmatpush1.msra.mxu0 0.0
        %619 = vmatprep.subr.mxu0 0.0
        %620 = vmatpush1.msra.mxu0 0.0
        %621 = vmatprep.subr.mxu0 0.0
        %622 = vmatpush1.msra.mxu0 0.0
        %623 = vmatprep.subr.mxu0 0.0
        %624 = vmatpush1.msra.mxu0 0.0
        %625 = vmatprep.subr.mxu0 0.0
        %626 = vmatpush1.msra.mxu0 0.0
        %627 = vmatprep.subr.mxu0 0.0
        %628 = vmatpush1.msra.mxu0 0.0
        %629 = vmatprep.subr.mxu0 0.0
        %630 = vmatpush1.msra.mxu0 0.0
        %631 = vmatprep.subr.mxu0 0.0
        %632 = vmatpush1.msra.mxu0 0.0
        %633 = vmatprep.subr.mxu0 0.0
        %v634 = vand.u32 %v277, 4294901760
        %v635 = vsub.f32 %v277, %v634
        %v636 = vand.u32 %v635, 4294901760
        %637 = vmatpush1.msra.mxu0 %v636
        %638 = vmatprep.subr.mxu0 0.0
        %v639 = vand.u32 %v276, 4294901760
        %v640 = vsub.f32 %v276, %v639
        %v641 = vand.u32 %v640, 4294901760
        %642 = vmatpush1.msra.mxu0 %v641
        %643 = vmatprep.subr.mxu0 0.0
        %v644 = vand.u32 %v275, 4294901760
        %v645 = vsub.f32 %v275, %v644
        %v646 = vand.u32 %v645, 4294901760
        %647 = vmatpush1.msra.mxu0 %v646
        %648 = vmatprep.subr.mxu0 0.0
        %v649 = vand.u32 %v274, 4294901760
        %v650 = vsub.f32 %v274, %v649
        %v651 = vand.u32 %v650, 4294901760
        %652 = vmatpush1.msra.mxu0 %v651
        %653 = vmatprep.subr.mxu0 0.0
        %654 = vmatpush2.msra.mxu0 0.0
        %655 = vmatprep.subr.mxu0 0.0
        %656 = vmatpush2.msra.mxu0 0.0
        %657 = vmatprep.subr.mxu0 0.0
        %658 = vmatpush2.msra.mxu0 0.0
        %659 = vmatprep.subr.mxu0 0.0
        %660 = vmatpush2.msra.mxu0 0.0
        %661 = vmatprep.subr.mxu0 0.0
        %662 = vmatpush2.msra.mxu0 0.0
        %663 = vmatprep.subr.mxu0 0.0
        %664 = vmatpush2.msra.mxu0 0.0
        %665 = vmatprep.subr.mxu0 0.0
        %666 = vmatpush2.msra.mxu0 0.0
        %667 = vmatprep.subr.mxu0 0.0
        %668 = vmatpush2.msra.mxu0 0.0
        %669 = vmatprep.subr.mxu0 0.0
        %670 = vmatpush2.msra.mxu0 0.0
        %671 = vmatprep.subr.mxu0 0.0
        %672 = vmatpush2.msra.mxu0 0.0
        %673 = vmatprep.subr.mxu0 0.0
        %674 = vmatpush2.msra.mxu0 0.0
        %675 = vmatprep.subr.mxu0 0.0
        %676 = vmatpush2.msra.mxu0 0.0
        %677 = vmatprep.subr.mxu0 0.0
        %678 = vmatpush2.msra.mxu0 0.0
        %679 = vmatprep.subr.mxu0 0.0
        %680 = vmatpush2.msra.mxu0 0.0
        %681 = vmatprep.subr.mxu0 0.0
        %682 = vmatpush2.msra.mxu0 0.0
        %683 = vmatprep.subr.mxu0 0.0
        %684 = vmatpush2.msra.mxu0 0.0
        %685 = vmatprep.mubr.f32.mxu0 0.0
        %v686 = vand.u32 %v280, 4294901760
        %687 = vmatmul.mubr.f32.gmra.mxu0 %v686
        %v688 = vpop.f32.mrf.mxu0
        %v689 = vadd.f32 %v606, %v688
        %v690 = vpop.f32.mrf.mxu0
        %691 = vdwg.mxu0
        %692 = vmatprep.subr.mxu0 0.0
        %693 = vmatpush1.msra.mxu0 0.0
        %694 = vmatprep.subr.mxu0 0.0
        %695 = vmatpush1.msra.mxu0 0.0
        %696 = vmatprep.subr.mxu0 0.0
        %697 = vmatpush1.msra.mxu0 0.0
        %698 = vmatprep.subr.mxu0 0.0
        %699 = vmatpush1.msra.mxu0 0.0
        %700 = vmatprep.subr.mxu0 0.0
        %701 = vmatpush1.msra.mxu0 0.0
        %702 = vmatprep.subr.mxu0 0.0
        %703 = vmatpush1.msra.mxu0 0.0
        %704 = vmatprep.subr.mxu0 0.0
        %705 = vmatpush1.msra.mxu0 0.0
        %706 = vmatprep.subr.mxu0 0.0
        %707 = vmatpush1.msra.mxu0 0.0
        %708 = vmatprep.subr.mxu0 0.0
        %709 = vmatpush1.msra.mxu0 0.0
        %710 = vmatprep.subr.mxu0 0.0
        %711 = vmatpush1.msra.mxu0 0.0
        %712 = vmatprep.subr.mxu0 0.0
        %713 = vmatpush1.msra.mxu0 0.0
        %714 = vmatprep.subr.mxu0 0.0
        %715 = vmatpush1.msra.mxu0 0.0
        %716 = vmatprep.subr.mxu0 0.0
        %v717 = vand.u32 %v277, 4294901760
        %718 = vmatpush1.msra.mxu0 %v717
        %719 = vmatprep.subr.mxu0 0.0
        %v720 = vand.u32 %v276, 4294901760
        %721 = vmatpush1.msra.mxu0 %v720
        %722 = vmatprep.subr.mxu0 0.0
        %v723 = vand.u32 %v275, 4294901760
        %724 = vmatpush1.msra.mxu0 %v723
        %725 = vmatprep.subr.mxu0 0.0
        %v726 = vand.u32 %v274, 4294901760
        %727 = vmatpush1.msra.mxu0 %v726
        %728 = vmatprep.subr.mxu0 0.0
        %729 = vmatpush2.msra.mxu0 0.0
        %730 = vmatprep.subr.mxu0 0.0
        %731 = vmatpush2.msra.mxu0 0.0
        %732 = vmatprep.subr.mxu0 0.0
        %733 = vmatpush2.msra.mxu0 0.0
        %734 = vmatprep.subr.mxu0 0.0
        %735 = vmatpush2.msra.mxu0 0.0
        %736 = vmatprep.subr.mxu0 0.0
        %737 = vmatpush2.msra.mxu0 0.0
        %738 = vmatprep.subr.mxu0 0.0
        %739 = vmatpush2.msra.mxu0 0.0
        %740 = vmatprep.subr.mxu0 0.0
        %741 = vmatpush2.msra.mxu0 0.0
        %742 = vmatprep.subr.mxu0 0.0
        %743 = vmatpush2.msra.mxu0 0.0
        %744 = vmatprep.subr.mxu0 0.0
        %745 = vmatpush2.msra.mxu0 0.0
        %746 = vmatprep.subr.mxu0 0.0
        %747 = vmatpush2.msra.mxu0 0.0
        %748 = vmatprep.subr.mxu0 0.0
        %749 = vmatpush2.msra.mxu0 0.0
        %750 = vmatprep.subr.mxu0 0.0
        %751 = vmatpush2.msra.mxu0 0.0
        %752 = vmatprep.subr.mxu0 0.0
        %753 = vmatpush2.msra.mxu0 0.0
        %754 = vmatprep.subr.mxu0 0.0
        %755 = vmatpush2.msra.mxu0 0.0
        %756 = vmatprep.subr.mxu0 0.0
        %757 = vmatpush2.msra.mxu0 0.0
        %758 = vmatprep.subr.mxu0 0.0
        %759 = vmatpush2.msra.mxu0 0.0
        %760 = vmatprep.mubr.f32.mxu0 0.0
        %v761 = vand.u32 %v280, 4294901760
        %762 = vmatmul.mubr.f32.gmra.mxu0 %v761
        %v763 = vpop.f32.mrf.mxu0
        %v764 = vadd.f32 %v689, %v763
        %v765 = vpop.f32.mrf.mxu0
        %766 = vdwg.mxu0
        %vm767 = vcmask 64512
        %768 = vst.msk [vmem:[%s246] sm:$0xff] %vm767, %v764
        %770 = vrot.lane.b32.xlu0 %v764, 120
        %v771 = vpop.permute.xlu0 %770
        %773 = vst.msk [vmem:[%s253] sm:$0xff] %vm767, %v771
        %774 = vrot.lane.b32.xlu0 %v764, 112
        %v775 = vpop.permute.xlu0 %774
        %777 = vst.msk [vmem:[%s260] sm:$0xff] %vm767, %v775
        %s778 = sand.u32 %s107, 1
        %s779 = scalar_lea.sflag [#allocation3], %s778
        %s780 = sand.u32 %s107, 1
        %s781 = smul.addr %s780, 8
        %s782 = scalar_lea.vmem [#allocation2], %s781
        %s783 = sand.u32 %s22, 1
        %s784 = scalar_lea.sflag [#allocation5], %s783
        %s785 = sand.u32 %s137, 1
        %s786 = smul.addr %s785, 8
        %s787 = scalar_lea.vmem [#allocation4], %s786
        %s788 = sand.u32 %s22, 1
        %s789 = scalar_lea.sflag [#allocation5], %s788
        %s790 = sand.u32 %s167, 1
        %s791 = smul.addr %s790, 8
        %s792 = scalar_lea.vmem [#allocation6], %s791
        // Predicated region
        $region29: #{tpu_custom_call.1} parent=27 // pred_check
          %p793 = pneg %p117
        $region30: #{tpu_custom_call.1} parent=27 // pred_check_branch
          %795 = sbr.rel (%p793) target = $region32
        $region31: #{tpu_custom_call.1} parent=27 // pred_region
          %s797 = ssub.s32 128, 128
          %798 = vsyncadd %s779, %s797
          %s799 = sadd.s32 %s28, %s29
          %s800 = smul.addr %s27, 4
          %s801 = sadd.s32 %s799, %s800
          %s802 = smul.addr %s801, 128
          %s803 = scalar_lea.hbm %s2, %s802
          %s805 = sshll.u32 %s782, 4
          %s806 = int_to_ptr.vmem [resolvable:$true] %s805
          %808 = dma.vmem_to_hbm [thread:$0]  %s806, 128, %s803, %s779
        $region32: #{tpu_custom_call.1} parent=27 // pred_fallthru
          _
        // Predicated region
        $region33: #{tpu_custom_call.1} parent=27 // pred_check
          %p809 = pneg %p147
        $region34: #{tpu_custom_call.1} parent=27 // pred_check_branch
          %811 = sbr.rel (%p809) target = $region36
        $region35: #{tpu_custom_call.1} parent=27 // pred_region
          %s813 = ssub.s32 128, 128
          %814 = vsyncadd %s784, %s813
          %s815 = sadd.s32 %s28, %s29
          %s816 = smul.addr %s27, 4
          %s817 = sadd.s32 %s815, %s816
          %s818 = smul.addr %s817, 128
          %s819 = scalar_lea.hbm %s3, %s818
          %s821 = sshll.u32 %s787, 4
          %s822 = int_to_ptr.vmem [resolvable:$true] %s821
          %824 = dma.vmem_to_hbm [thread:$0]  %s822, 128, %s819, %s784
        $region36: #{tpu_custom_call.1} parent=27 // pred_fallthru
          _
        // Predicated region
        $region37: #{tpu_custom_call.1} parent=27 // pred_check
          %p825 = pneg %p177
        $region38: #{tpu_custom_call.1} parent=27 // pred_check_branch
          %827 = sbr.rel (%p825) target = $region40
        $region39: #{tpu_custom_call.1} parent=27 // pred_region
          %s829 = ssub.s32 128, 128
          %830 = vsyncadd %s789, %s829
          %s831 = sadd.s32 %s28, %s29
          %s832 = smul.addr %s27, 4
          %s833 = sadd.s32 %s831, %s832
          %s834 = smul.addr %s833, 128
          %s835 = scalar_lea.hbm %s4, %s834
          %s837 = sshll.u32 %s792, 4
          %s838 = int_to_ptr.vmem [resolvable:$true] %s837
          %840 = dma.vmem_to_hbm [thread:$0]  %s838, 128, %s835, %s789
        $region40: #{tpu_custom_call.1} parent=27 // pred_fallthru
          _
      $region28: #{tpu_custom_call.1} parent=5 // pred_fallthru
        _
      %p841 = scmp.le.s32.totalorder 2, %s17
      // Predicated region
      $region41: #{tpu_custom_call.1} parent=5 // pred_check
        %p842 = pneg %p841
      $region42: #{tpu_custom_call.1} parent=5 // pred_check_branch
        %844 = sbr.rel (%p842) target = $region44
      $region43: #{tpu_custom_call.1} parent=5 // pred_region
        %s845 = ssub.s32 %s17, 2
        // Predicated region
        $region45: #{tpu_custom_call.1} parent=43 // pred_check
          %p846 = pneg %p123
        $region46: #{tpu_custom_call.1} parent=43 // pred_check_branch
          %848 = sbr.rel (%p846) target = $region48
        $region47: #{tpu_custom_call.1} parent=43 // pred_region
          %s849 = sand.u32 %s108, 1
          %s850 = scalar_lea.sflag [#allocation3], %s849
          %s851 = sand.u32 %s108, 1
          %s852 = smul.addr %s851, 8
          %s853 = scalar_lea.vmem [#allocation2], %s852
          %854 = dma.done %s850, 128
        $region48: #{tpu_custom_call.1} parent=43 // pred_fallthru
          _
        // Predicated region
        $region49: #{tpu_custom_call.1} parent=43 // pred_check
          %p855 = pneg %p153
        $region50: #{tpu_custom_call.1} parent=43 // pred_check_branch
          %857 = sbr.rel (%p855) target = $region52
        $region51: #{tpu_custom_call.1} parent=43 // pred_region
          %s858 = sand.u32 %s23, 1
          %s859 = scalar_lea.sflag [#allocation5], %s858
          %s860 = sand.u32 %s138, 1
          %s861 = smul.addr %s860, 8
          %s862 = scalar_lea.vmem [#allocation4], %s861
          %863 = dma.done %s859, 128
        $region52: #{tpu_custom_call.1} parent=43 // pred_fallthru
          _
        // Predicated region
        $region53: #{tpu_custom_call.1} parent=43 // pred_check
          %p864 = pneg %p183
        $region54: #{tpu_custom_call.1} parent=43 // pred_check_branch
          %866 = sbr.rel (%p864) target = $region56
        $region55: #{tpu_custom_call.1} parent=43 // pred_region
          %s867 = sand.u32 %s23, 1
          %s868 = scalar_lea.sflag [#allocation5], %s867
          %s869 = sand.u32 %s168, 1
          %s870 = smul.addr %s869, 8
          %s871 = scalar_lea.vmem [#allocation6], %s870
          %872 = dma.done %s868, 128
        $region56: #{tpu_custom_call.1} parent=43 // pred_fallthru
          _
      $region44: #{tpu_custom_call.1} parent=5 // pred_fallthru
        _
    $region6: #{tpu_custom_call.1} parent=1 // loop_footer
      %s21 = sadd.s32 1, %s17
    $region7: #{tpu_custom_call.1} parent=1 // loop_footer_branch
      %16 = sbr.rel target = $region3
    $region8: #{tpu_custom_call.1} parent=1 // loop_exit
      _
    %873 = vsyncpa [#allocation3], 1
    %s874 = scalar_lea.sflag [#allocation3], 1
    %875 = vsyncpa %s874, 1
    %876 = vsyncpa [#allocation5], 1
    %s877 = scalar_lea.sflag [#allocation5], 1
    %878 = vsyncpa %s877, 1

</llo_original>
